<compile_context>
chip_gen: v6e
topology: v6e:2x2x1
jax: 0.10.0
libtpu: 0.0.40
codegen_flags: <defaults>
</compile_context>

<pallas_src>
import jax
import jax.numpy as jnp
from jax.experimental import pallas as pl
from jax.experimental.pallas import tpu as pltpu


def dueling_q_kernel(x_ref, w1_ref, b1_ref, w2_ref, b2_ref, wq_ref, bq_ref, q_ref):
    # One batch tile per grid step; all weights resident in VMEM across the grid.
    x = x_ref[...]

    h1 = jnp.dot(x, w1_ref[...], preferred_element_type=jnp.float32) + b1_ref[...]
    h1 = jnp.maximum(h1, 0.0)

    h2 = jnp.dot(h1, w2_ref[...], preferred_element_type=jnp.float32) + b2_ref[...]
    h2 = jnp.maximum(h2, 0.0)

    # Folded head: emits Q-values directly (dueling combine pre-baked into wq/bq).
    q = jnp.dot(h2, wq_ref[...], preferred_element_type=jnp.float32) + bq_ref[...]
    q_ref[...] = q.astype(q_ref.dtype)


def _round_up(n, m):
    return ((n + m - 1) // m) * m


def fold_head_params(params):
    """Fold value head + advantage head + dueling combine into ONE (fc2, A) linear.

    Q = V + (Adv - mean(Adv)) is linear in h2, so:
      wq[:, j] = wv[:, 0] + wa[:, j] - mean_k(wa[:, k])
      bq[j]    = bv       + ba[j]    - mean_k(ba[k])
    Call once when params change (not per forward)."""
    wq = params["wv"] + params["wa"] - jnp.mean(params["wa"], axis=1, keepdims=True)
    bq = params["bv"] + params["ba"] - jnp.mean(params["ba"], axis=1, keepdims=True)
    return {"w1": params["w1"], "b1": params["b1"],
            "w2": params["w2"], "b2": params["b2"],
            "wq": wq, "bq": bq}


def dueling_q_forward(state, folded, *, block_batch=512, out_dtype=jnp.float32):
    """state: (B, state_size) f32.  folded: output of fold_head_params."""
    B, state_size = state.shape
    fc1 = folded["w1"].shape[1]
    fc2 = folded["w2"].shape[1]
    A = folded["wq"].shape[1]

    # Batch tile: multiple of 8 (f32 sublanes); don't exceed what the batch needs.
    bb = min(block_batch, max(8, _round_up(B, 8)))
    # Keep >=2 grid steps when the batch is big enough to split, so the
    # "parallel" batch axis actually shards across v7x's two TensorCores.
    if pl.cdiv(B, bb) < 2 and B >= 16:
        bb = max(8, _round_up(pl.cdiv(B, 2), 8))
    grid = (pl.cdiv(B, bb),)

    flops = 2 * B * (state_size * fc1 + fc1 * fc2 + fc2 * A)
    bytes_accessed = 4 * (B * state_size + B * A
                          + state_size * fc1 + fc1
                          + fc1 * fc2 + fc2
                          + fc2 * A + A)
    cost = pl.CostEstimate(flops=flops, transcendentals=0,
                           bytes_accessed=bytes_accessed)

    # VMEM estimate: double-buffered x/out tiles + resident weights + intermediates.
    vmem_est = 4 * (2 * bb * (state_size + A)        # x / q tiles, double-buffered
                    + bb * (fc1 + fc2)               # h1 / h2 intermediates
                    + 2 * (state_size * fc1 + fc1 + fc1 * fc2 + fc2 + fc2 * A + A))
    compiler_kwargs = dict(dimension_semantics=("parallel",))
    if vmem_est > (16 << 20):
        # Only matters for very large tiles (v5e's default scoped VMEM is 16 MiB).
        compiler_kwargs["vmem_limit_bytes"] = int(min(vmem_est * 2, 60 << 20))

    in_specs = [
        pl.BlockSpec((bb, state_size), lambda i: (i, 0)),    # x: tiled over batch
        pl.BlockSpec((state_size, fc1), lambda i: (0, 0)),   # w1: pinned
        pl.BlockSpec((1, fc1), lambda i: (0, 0)),            # b1: pinned
        pl.BlockSpec((fc1, fc2), lambda i: (0, 0)),          # w2: pinned
        pl.BlockSpec((1, fc2), lambda i: (0, 0)),            # b2: pinned
        pl.BlockSpec((fc2, A), lambda i: (0, 0)),            # folded head W: pinned
        pl.BlockSpec((1, A), lambda i: (0, 0)),              # folded head b: pinned
    ]
    out_spec = pl.BlockSpec((bb, A), lambda i: (i, 0))       # narrow (B, A) output

    return pl.pallas_call(
        dueling_q_kernel,
        out_shape=jax.ShapeDtypeStruct((B, A), out_dtype),
        grid=grid,
        in_specs=in_specs,
        out_specs=out_spec,
        compiler_params=pltpu.CompilerParams(**compiler_kwargs),
        cost_estimate=cost,
    )(state, folded["w1"], folded["b1"], folded["w2"], folded["b2"],
      folded["wq"], folded["bq"])


def init_params(key, state_size, action_size, fc1_units=64, fc2_units=64):
    """Deterministic init mimicking PyTorch's default Linear init:
    U(-1/sqrt(fan_in), 1/sqrt(fan_in)) for both weight and bias. Weights stored
    pre-transposed as (in, out); biases as (1, out)."""
    def linear(k, fan_in, fan_out):
        kw, kb = jax.random.split(k)
        bound = 1.0 / jnp.sqrt(jnp.float32(fan_in))
        w = jax.random.uniform(kw, (fan_in, fan_out), jnp.float32, -bound, bound)
        b = jax.random.uniform(kb, (1, fan_out), jnp.float32, -bound, bound)
        return w, b

    k1, k2, k3, k4 = jax.random.split(key, 4)
    w1, b1 = linear(k1, state_size, fc1_units)
    w2, b2 = linear(k2, fc1_units, fc2_units)
    wv, bv = linear(k3, fc2_units, 1)
    wa, ba = linear(k4, fc2_units, action_size)
    return {"w1": w1, "b1": b1, "w2": w2, "b2": b2,
            "wv": wv, "bv": bv, "wa": wa, "ba": ba}


def reference_forward(state, p):
    """Plain-JAX reference matching the PyTorch forward semantics."""
    h1 = jax.nn.relu(state @ p["w1"] + p["b1"])
    h2 = jax.nn.relu(h1 @ p["w2"] + p["b2"])
    value = h2 @ p["wv"] + p["bv"]
    advantage = h2 @ p["wa"] + p["ba"]
    return value + (advantage - advantage.mean(axis=1, keepdims=True))


if __name__ == "__main__":
    # Small shapes consistent with the module: state_size=8, action_size=4, batch=2.
    batch, state_size, action_size = 2, 8, 4
    fc1_units, fc2_units = 64, 64

    key = jax.random.PRNGKey(0)
    k_params, k_state = jax.random.split(key)
    params = init_params(k_params, state_size, action_size, fc1_units, fc2_units)
    state = jax.random.normal(k_state, (batch, state_size), jnp.float32)

    folded = fold_head_params(params)   # hoisted: computed once, not per forward
    q = dueling_q_forward(state, folded)
    q = jax.block_until_ready(q)

    q_ref = reference_forward(state, params)
    assert q.shape == (batch, action_size)
    assert jnp.allclose(q, q_ref, atol=1e-5, rtol=1e-5), "mismatch vs reference"

    print("KERNEL_OK")
</pallas_src>

<mosaic_0001>
module attributes {stable_mosaic.version = 11 : i64} {
  func.func @dueling_q_kernel(%arg0: i32, %arg1: memref<8x8xf32, #tpu.memory_space<vmem>>, %arg2: memref<8x64xf32, #tpu.memory_space<vmem>>, %arg3: memref<1x64xf32, #tpu.memory_space<vmem>>, %arg4: memref<64x64xf32, #tpu.memory_space<vmem>>, %arg5: memref<1x64xf32, #tpu.memory_space<vmem>>, %arg6: memref<64x4xf32, #tpu.memory_space<vmem>>, %arg7: memref<1x4xf32, #tpu.memory_space<vmem>>, %arg8: memref<8x4xf32, #tpu.memory_space<vmem>>) attributes {dimension_semantics = [#tpu.dimension_semantics<parallel>], iteration_bounds = array<i64: 1>, scalar_prefetch = 0 : i64, scratch_operands = 0 : i64, tpu.core_type = #tpu.core_type<tc>, window_params = [{transform_indices = @transform_0, window_bounds = array<i64: 8, 8>}, {pipeline_mode = #tpu.pipeline_mode<synchronous>, transform_indices = @transform_1, window_bounds = array<i64: 8, 64>}, {pipeline_mode = #tpu.pipeline_mode<synchronous>, transform_indices = @transform_2, window_bounds = array<i64: 1, 64>}, {pipeline_mode = #tpu.pipeline_mode<synchronous>, transform_indices = @transform_3, window_bounds = array<i64: 64, 64>}, {pipeline_mode = #tpu.pipeline_mode<synchronous>, transform_indices = @transform_4, window_bounds = array<i64: 1, 64>}, {pipeline_mode = #tpu.pipeline_mode<synchronous>, transform_indices = @transform_5, window_bounds = array<i64: 64, 4>}, {pipeline_mode = #tpu.pipeline_mode<synchronous>, transform_indices = @transform_6, window_bounds = array<i64: 1, 4>}, {transform_indices = @transform_7, window_bounds = array<i64: 8, 4>}]} {
    %c0 = arith.constant 0 : index
    %c0_0 = arith.constant 0 : index
    %0 = vector.load %arg1[%c0, %c0_0] : memref<8x8xf32, #tpu.memory_space<vmem>>, vector<8x8xf32>
    %c0_1 = arith.constant 0 : index
    %c0_2 = arith.constant 0 : index
    %1 = vector.load %arg2[%c0_1, %c0_2] : memref<8x64xf32, #tpu.memory_space<vmem>>, vector<8x64xf32>
    %cst = arith.constant dense<0.000000e+00> : vector<8x64xf32>
    %2 = tpu.matmul %0, %1, %cst {dimension_numbers = #tpu.dot_dimension_numbers<[1], [0], [0], [1], [0, 0, 1, 1], [], []>} : vector<8x8xf32>, vector<8x64xf32>, vector<8x64xf32> -> vector<8x64xf32>
    %c0_3 = arith.constant 0 : index
    %c0_4 = arith.constant 0 : index
    %3 = vector.load %arg3[%c0_3, %c0_4] : memref<1x64xf32, #tpu.memory_space<vmem>>, vector<1x64xf32>
    %4 = vector.broadcast %3 : vector<1x64xf32> to vector<8x64xf32>
    %5 = arith.addf %2, %4 : vector<8x64xf32>
    %cst_5 = arith.constant 0.000000e+00 : f32
    %6 = vector.broadcast %cst_5 : f32 to vector<8x64xf32>
    %7 = arith.maximumf %5, %6 : vector<8x64xf32>
    %c0_6 = arith.constant 0 : index
    %c0_7 = arith.constant 0 : index
    %8 = vector.load %arg4[%c0_6, %c0_7] : memref<64x64xf32, #tpu.memory_space<vmem>>, vector<64x64xf32>
    %cst_8 = arith.constant dense<0.000000e+00> : vector<8x64xf32>
    %9 = tpu.matmul %7, %8, %cst_8 {dimension_numbers = #tpu.dot_dimension_numbers<[1], [0], [0], [1], [0, 0, 1, 1], [], []>} : vector<8x64xf32>, vector<64x64xf32>, vector<8x64xf32> -> vector<8x64xf32>
    %c0_9 = arith.constant 0 : index
    %c0_10 = arith.constant 0 : index
    %10 = vector.load %arg5[%c0_9, %c0_10] : memref<1x64xf32, #tpu.memory_space<vmem>>, vector<1x64xf32>
    %11 = vector.broadcast %10 : vector<1x64xf32> to vector<8x64xf32>
    %12 = arith.addf %9, %11 : vector<8x64xf32>
    %cst_11 = arith.constant 0.000000e+00 : f32
    %13 = vector.broadcast %cst_11 : f32 to vector<8x64xf32>
    %14 = arith.maximumf %12, %13 : vector<8x64xf32>
    %c0_12 = arith.constant 0 : index
    %c0_13 = arith.constant 0 : index
    %15 = vector.load %arg6[%c0_12, %c0_13] : memref<64x4xf32, #tpu.memory_space<vmem>>, vector<64x4xf32>
    %cst_14 = arith.constant dense<0.000000e+00> : vector<8x4xf32>
    %16 = tpu.matmul %14, %15, %cst_14 {dimension_numbers = #tpu.dot_dimension_numbers<[1], [0], [0], [1], [0, 0, 1, 1], [], []>} : vector<8x64xf32>, vector<64x4xf32>, vector<8x4xf32> -> vector<8x4xf32>
    %c0_15 = arith.constant 0 : index
    %c0_16 = arith.constant 0 : index
    %17 = vector.load %arg7[%c0_15, %c0_16] : memref<1x4xf32, #tpu.memory_space<vmem>>, vector<1x4xf32>
    %18 = vector.broadcast %17 : vector<1x4xf32> to vector<8x4xf32>
    %19 = arith.addf %16, %18 : vector<8x4xf32>
    %c0_17 = arith.constant 0 : index
    %c0_18 = arith.constant 0 : index
    %20 = vector.load %arg8[%c0_17, %c0_18] : memref<8x4xf32, #tpu.memory_space<vmem>>, vector<8x4xf32>
    tpu.vector_store %arg8[%c0_17, %c0_18], %19 {strides = array<i32>} : memref<8x4xf32, #tpu.memory_space<vmem>>, vector<8x4xf32>,
    return
  }
  func.func @transform_0(%arg0: i32) -> (i32, i32) {
    %c0_i32 = arith.constant 0 : i32
    %c0_i32_0 = arith.constant 0 : i32
    return %arg0, %c0_i32 : i32, i32
  }
  func.func @transform_1(%arg0: i32) -> (i32, i32) {
    %c0_i32 = arith.constant 0 : i32
    %c0_i32_0 = arith.constant 0 : i32
    %c0_i32_1 = arith.constant 0 : i32
    return %c0_i32, %c0_i32_0 : i32, i32
  }
  func.func @transform_2(%arg0: i32) -> (i32, i32) {
    %c0_i32 = arith.constant 0 : i32
    %c0_i32_0 = arith.constant 0 : i32
    %c0_i32_1 = arith.constant 0 : i32
    return %c0_i32, %c0_i32_0 : i32, i32
  }
  func.func @transform_3(%arg0: i32) -> (i32, i32) {
    %c0_i32 = arith.constant 0 : i32
    %c0_i32_0 = arith.constant 0 : i32
    %c0_i32_1 = arith.constant 0 : i32
    return %c0_i32, %c0_i32_0 : i32, i32
  }
  func.func @transform_4(%arg0: i32) -> (i32, i32) {
    %c0_i32 = arith.constant 0 : i32
    %c0_i32_0 = arith.constant 0 : i32
    %c0_i32_1 = arith.constant 0 : i32
    return %c0_i32, %c0_i32_0 : i32, i32
  }
  func.func @transform_5(%arg0: i32) -> (i32, i32) {
    %c0_i32 = arith.constant 0 : i32
    %c0_i32_0 = arith.constant 0 : i32
    %c0_i32_1 = arith.constant 0 : i32
    return %c0_i32, %c0_i32_0 : i32, i32
  }
  func.func @transform_6(%arg0: i32) -> (i32, i32) {
    %c0_i32 = arith.constant 0 : i32
    %c0_i32_0 = arith.constant 0 : i32
    %c0_i32_1 = arith.constant 0 : i32
    return %c0_i32, %c0_i32_0 : i32, i32
  }
  func.func @transform_7(%arg0: i32) -> (i32, i32) {
    %c0_i32 = arith.constant 0 : i32
    %c0_i32_0 = arith.constant 0 : i32
    return %arg0, %c0_i32 : i32, i32
  }
}

</mosaic_0001>

<llo_original>
// kernel: tpu_custom_call.1
$region0: #{tpu_custom_call.1}
  #allocation0 [shape = 'u32[]', space=smem, size = 0x4, offset = 0x4, fixed_abs, tag = 'smem constant byte address 0x4 - core index']
  #allocation1 [shape = 'u32[144,128]{1,0:T(1,128)}', space=vmem, size = 0x12000, scoped, tag = 'internal scratch']
  %s0 = inlined_call_operand.hbm [shape: f32[2,8], index: 0, kind: input, shape index: {}]
  %s1 = inlined_call_operand.vmem [shape: f32[8,64], index: 1, kind: input, shape index: {}]
  %s2 = inlined_call_operand.vmem [shape: f32[1,64], index: 2, kind: input, shape index: {}]
  %s3 = inlined_call_operand.vmem [shape: f32[64,64], index: 3, kind: input, shape index: {}]
  %s4 = inlined_call_operand.hbm [shape: f32[1,64], index: 4, kind: input, shape index: {}]
  %s5 = inlined_call_operand.vmem [shape: f32[64,4], index: 5, kind: input, shape index: {}]
  %s6 = inlined_call_operand.vmem [shape: f32[1,4], index: 6, kind: input, shape index: {}]
  %s7 = inlined_call_operand.hbm [shape: f32[2,4], index: 7, kind: output, shape index: {}]
  %s8 = sld [smem:[#allocation0]]
  $region46: #{tpu_custom_call.1} parent=0
    _
  %s10 = ssub.s32 1, %s8
  %s11 = scalar_select 0, %s10, %s8
  $region1: #{tpu_custom_call.1} parent=0
    #allocation2 [shape = 'u8[4096]{0}', space=vmem, size = 0x1000, scoped, tag = 'input window, operand 0, single buffered']
    #allocation3 [shape = 's32[1]{0}', space=sflag, size = 0x4, scoped, tag = 'scoped memory for tpu_custom_call.1']
    #allocation4 [shape = 's32[1]{0}', space=sflag, size = 0x4, scoped, tag = 'scoped memory for tpu_custom_call.1']
    #allocation5 [shape = 'u8[512]{0}', space=vmem, size = 0x400, scoped, tag = 'input window, operand 4, single buffered']
    #allocation6 [shape = 's32[1]{0}', space=sflag, size = 0x4, scoped, tag = 'scoped memory for tpu_custom_call.1']
    #allocation7 [shape = 'u8[4096]{0}', space=vmem, size = 0x1000, scoped, tag = 'output window, operand 0, single buffered']
    %12 = vsyncpa [#allocation3], 0
    %13 = vsyncpa [#allocation6], 0
    %14 = vsyncpa [#allocation4], 0
    // Predicated region
    $region2: #{tpu_custom_call.1} parent=1 // pred_check
      _
    $region3: #{tpu_custom_call.1} parent=1 // pred_check_branch
      %16 = sbr.rel (0) target = $region5
    $region4: #{tpu_custom_call.1} parent=1 // pred_region
      %s18 = ssub.s32 128, 32
      %19 = vsyncadd [#allocation3], %s18
      %s20 = sshll.u32 [#allocation2], 4
      %s21 = int_to_ptr.vmem [resolvable:$true] %s20
      %26 = dma.hbm_to_vmem [thread:$0]  %s0, 32, %s21, [#allocation3], 32, 32, 2
    $region5: #{tpu_custom_call.1} parent=1 // pred_fallthru
      _
    // Predicated region
    $region6: #{tpu_custom_call.1} parent=1 // pred_check
      _
    $region7: #{tpu_custom_call.1} parent=1 // pred_check_branch
      %28 = sbr.rel (0) target = $region9
    $region8: #{tpu_custom_call.1} parent=1 // pred_region
      _
    $region9: #{tpu_custom_call.1} parent=1 // pred_fallthru
      _
    // Predicated region
    $region10: #{tpu_custom_call.1} parent=1 // pred_check
      _
    $region11: #{tpu_custom_call.1} parent=1 // pred_check_branch
      %30 = sbr.rel (0) target = $region13
    $region12: #{tpu_custom_call.1} parent=1 // pred_region
      _
    $region13: #{tpu_custom_call.1} parent=1 // pred_fallthru
      _
    // Predicated region
    $region14: #{tpu_custom_call.1} parent=1 // pred_check
      _
    $region15: #{tpu_custom_call.1} parent=1 // pred_check_branch
      %32 = sbr.rel (0) target = $region17
    $region16: #{tpu_custom_call.1} parent=1 // pred_region
      _
    $region17: #{tpu_custom_call.1} parent=1 // pred_fallthru
      _
    // Predicated region
    $region18: #{tpu_custom_call.1} parent=1 // pred_check
      _
    $region19: #{tpu_custom_call.1} parent=1 // pred_check_branch
      %34 = sbr.rel (0) target = $region21
    $region20: #{tpu_custom_call.1} parent=1 // pred_region
      %s36 = ssub.s32 16, 16
      %37 = vsyncadd [#allocation6], %s36
      %s39 = sshll.u32 [#allocation5], 4
      %s40 = int_to_ptr.vmem [resolvable:$true] %s39
      %42 = dma.hbm_to_vmem [thread:$0]  %s4, 16, %s40, [#allocation6]
    $region21: #{tpu_custom_call.1} parent=1 // pred_fallthru
      _
    // Predicated region
    $region22: #{tpu_custom_call.1} parent=1 // pred_check
      _
    $region23: #{tpu_custom_call.1} parent=1 // pred_check_branch
      %44 = sbr.rel (0) target = $region25
    $region24: #{tpu_custom_call.1} parent=1 // pred_region
      _
    $region25: #{tpu_custom_call.1} parent=1 // pred_fallthru
      _
    // Predicated region
    $region26: #{tpu_custom_call.1} parent=1 // pred_check
      _
    $region27: #{tpu_custom_call.1} parent=1 // pred_check_branch
      %46 = sbr.rel (0) target = $region29
    $region28: #{tpu_custom_call.1} parent=1 // pred_region
      _
    $region29: #{tpu_custom_call.1} parent=1 // pred_fallthru
      _
    // Predicated region
    $region30: #{tpu_custom_call.1} parent=1 // pred_check
      _
    $region31: #{tpu_custom_call.1} parent=1 // pred_check_branch
      %48 = sbr.rel (0) target = $region33
    $region32: #{tpu_custom_call.1} parent=1 // pred_region
      %49 = dma.done [#allocation3], 128
    $region33: #{tpu_custom_call.1} parent=1 // pred_fallthru
      _
    // Predicated region
    $region34: #{tpu_custom_call.1} parent=1 // pred_check
      _
    $region35: #{tpu_custom_call.1} parent=1 // pred_check_branch
      %51 = sbr.rel (0) target = $region37
    $region36: #{tpu_custom_call.1} parent=1 // pred_region
      %52 = dma.done [#allocation6], 16
    $region37: #{tpu_custom_call.1} parent=1 // pred_fallthru
      _
    %v53 = vld [vmem:[#allocation2] sm:$0xff]
    %v54 = vld [vmem:[%s1] sm:$0xff]
    %v55 = vld [vmem:[%s2] sm:$0x1]
    %v57 = vlaneseq
    %v58 = vshrl.u32 %v57, 7
    %v59 = vsub.s32 0, %v58
    %v60 = vrot.slane %v55, %v59
    %vm62 = vcmask 64512
    %v64 = vsel %vm62, %v53, 0
    %66 = vmatprep.subr.mxu0 0.0
    %67 = vmatpush1.msra.mxu0 0.0
    %68 = vmatprep.subr.mxu0 0.0
    %69 = vmatpush1.msra.mxu0 0.0
    %70 = vmatprep.subr.mxu0 0.0
    %71 = vmatpush1.msra.mxu0 0.0
    %72 = vmatprep.subr.mxu0 0.0
    %73 = vmatpush1.msra.mxu0 0.0
    %74 = vmatprep.subr.mxu0 0.0
    %75 = vmatpush1.msra.mxu0 0.0
    %76 = vmatprep.subr.mxu0 0.0
    %77 = vmatpush1.msra.mxu0 0.0
    %78 = vmatprep.subr.mxu0 0.0
    %79 = vmatpush1.msra.mxu0 0.0
    %80 = vmatprep.subr.mxu0 0.0
    %81 = vmatpush1.msra.mxu0 0.0
    %82 = vmatprep.subr.mxu0 0.0
    %83 = vmatpush1.msra.mxu0 0.0
    %84 = vmatprep.subr.mxu0 0.0
    %85 = vmatpush1.msra.mxu0 0.0
    %86 = vmatprep.subr.mxu0 0.0
    %87 = vmatpush1.msra.mxu0 0.0
    %88 = vmatprep.subr.mxu0 0.0
    %89 = vmatpush1.msra.mxu0 0.0
    %90 = vmatprep.subr.mxu0 0.0
    %91 = vmatpush1.msra.mxu0 0.0
    %92 = vmatprep.subr.mxu0 0.0
    %93 = vmatpush1.msra.mxu0 0.0
    %94 = vmatprep.subr.mxu0 0.0
    %95 = vmatpush1.msra.mxu0 0.0
    %96 = vmatprep.subr.mxu0 0.0
    %97 = vmatpush1.msra.mxu0 %v54
    %98 = vmatprep.subr.mxu0 0.0
    %99 = vmatpush2.msra.mxu0 0.0
    %100 = vmatprep.subr.mxu0 0.0
    %101 = vmatpush2.msra.mxu0 0.0
    %102 = vmatprep.subr.mxu0 0.0
    %103 = vmatpush2.msra.mxu0 0.0
    %104 = vmatprep.subr.mxu0 0.0
    %105 = vmatpush2.msra.mxu0 0.0
    %106 = vmatprep.subr.mxu0 0.0
    %107 = vmatpush2.msra.mxu0 0.0
    %108 = vmatprep.subr.mxu0 0.0
    %109 = vmatpush2.msra.mxu0 0.0
    %110 = vmatprep.subr.mxu0 0.0
    %111 = vmatpush2.msra.mxu0 0.0
    %112 = vmatprep.subr.mxu0 0.0
    %113 = vmatpush2.msra.mxu0 0.0
    %114 = vmatprep.subr.mxu0 0.0
    %115 = vmatpush2.msra.mxu0 0.0
    %116 = vmatprep.subr.mxu0 0.0
    %117 = vmatpush2.msra.mxu0 0.0
    %118 = vmatprep.subr.mxu0 0.0
    %119 = vmatpush2.msra.mxu0 0.0
    %120 = vmatprep.subr.mxu0 0.0
    %121 = vmatpush2.msra.mxu0 0.0
    %122 = vmatprep.subr.mxu0 0.0
    %123 = vmatpush2.msra.mxu0 0.0
    %124 = vmatprep.subr.mxu0 0.0
    %125 = vmatpush2.msra.mxu0 0.0
    %126 = vmatprep.subr.mxu0 0.0
    %127 = vmatpush2.msra.mxu0 0.0
    %128 = vmatprep.subr.mxu0 0.0
    %129 = vmatpush2.msra.mxu0 0.0
    %130 = vmatprep.mubr.f32.mxu0 0.0
    %131 = vmatmul.mubr.f32.gmra.mxu0 %v64
    %v132 = vpop.f32.mrf.mxu0
    %v133 = vadd.f32 %v60, %v132
    %v134 = vpop.f32.mrf.mxu0
    %135 = vdwg.mxu0
    %v136 = vmax.f32 %v133, 0.0
    %v137 = vld [vmem:[%s3] sm:$0xff]
    %v138 = vld [vmem:[%s3 + $0x8] sm:$0xff]
    %v139 = vld [vmem:[%s3 + $0x10] sm:$0xff]
    %v140 = vld [vmem:[%s3 + $0x18] sm:$0xff]
    %v141 = vld [vmem:[%s3 + $0x20] sm:$0xff]
    %v142 = vld [vmem:[%s3 + $0x28] sm:$0xff]
    %v143 = vld [vmem:[%s3 + $0x30] sm:$0xff]
    %v144 = vld [vmem:[%s3 + $0x38] sm:$0xff]
    %v145 = vld [vmem:[#allocation5] sm:$0x1]
    %v147 = vlaneseq
    %v148 = vshrl.u32 %v147, 7
    %v149 = vsub.s32 0, %v148
    %v150 = vrot.slane %v145, %v149
    %vm152 = vcmask 523264
    %v154 = vsel %vm152, %v136, 0
    %156 = vmatprep.subr.mxu0 0.0
    %157 = vmatpush1.msra.mxu0 0.0
    %158 = vmatprep.subr.mxu0 0.0
    %159 = vmatpush1.msra.mxu0 0.0
    %160 = vmatprep.subr.mxu0 0.0
    %161 = vmatpush1.msra.mxu0 0.0
    %162 = vmatprep.subr.mxu0 0.0
    %163 = vmatpush1.msra.mxu0 0.0
    %164 = vmatprep.subr.mxu0 0.0
    %165 = vmatpush1.msra.mxu0 0.0
    %166 = vmatprep.subr.mxu0 0.0
    %167 = vmatpush1.msra.mxu0 0.0
    %168 = vmatprep.subr.mxu0 0.0
    %169 = vmatpush1.msra.mxu0 0.0
    %170 = vmatprep.subr.mxu0 0.0
    %171 = vmatpush1.msra.mxu0 0.0
    %172 = vmatprep.subr.mxu0 0.0
    %173 = vmatpush1.msra.mxu0 %v144
    %174 = vmatprep.subr.mxu0 0.0
    %175 = vmatpush1.msra.mxu0 %v143
    %176 = vmatprep.subr.mxu0 0.0
    %177 = vmatpush1.msra.mxu0 %v142
    %178 = vmatprep.subr.mxu0 0.0
    %179 = vmatpush1.msra.mxu0 %v141
    %180 = vmatprep.subr.mxu0 0.0
    %181 = vmatpush1.msra.mxu0 %v140
    %182 = vmatprep.subr.mxu0 0.0
    %183 = vmatpush1.msra.mxu0 %v139
    %184 = vmatprep.subr.mxu0 0.0
    %185 = vmatpush1.msra.mxu0 %v138
    %186 = vmatprep.subr.mxu0 0.0
    %187 = vmatpush1.msra.mxu0 %v137
    %188 = vmatprep.subr.mxu0 0.0
    %189 = vmatpush2.msra.mxu0 0.0
    %190 = vmatprep.subr.mxu0 0.0
    %191 = vmatpush2.msra.mxu0 0.0
    %192 = vmatprep.subr.mxu0 0.0
    %193 = vmatpush2.msra.mxu0 0.0
    %194 = vmatprep.subr.mxu0 0.0
    %195 = vmatpush2.msra.mxu0 0.0
    %196 = vmatprep.subr.mxu0 0.0
    %197 = vmatpush2.msra.mxu0 0.0
    %198 = vmatprep.subr.mxu0 0.0
    %199 = vmatpush2.msra.mxu0 0.0
    %200 = vmatprep.subr.mxu0 0.0
    %201 = vmatpush2.msra.mxu0 0.0
    %202 = vmatprep.subr.mxu0 0.0
    %203 = vmatpush2.msra.mxu0 0.0
    %204 = vmatprep.subr.mxu0 0.0
    %205 = vmatpush2.msra.mxu0 0.0
    %206 = vmatprep.subr.mxu0 0.0
    %207 = vmatpush2.msra.mxu0 0.0
    %208 = vmatprep.subr.mxu0 0.0
    %209 = vmatpush2.msra.mxu0 0.0
    %210 = vmatprep.subr.mxu0 0.0
    %211 = vmatpush2.msra.mxu0 0.0
    %212 = vmatprep.subr.mxu0 0.0
    %213 = vmatpush2.msra.mxu0 0.0
    %214 = vmatprep.subr.mxu0 0.0
    %215 = vmatpush2.msra.mxu0 0.0
    %216 = vmatprep.subr.mxu0 0.0
    %217 = vmatpush2.msra.mxu0 0.0
    %218 = vmatprep.subr.mxu0 0.0
    %219 = vmatpush2.msra.mxu0 0.0
    %220 = vmatprep.mubr.f32.mxu0 0.0
    %221 = vmatmul.mubr.f32.gmra.mxu0 %v154
    %v222 = vpop.f32.mrf.mxu0
    %v223 = vadd.f32 %v150, %v222
    %v224 = vpop.f32.mrf.mxu0
    %225 = vdwg.mxu0
    %v226 = vmax.f32 %v223, 0.0
    %v227 = vld [vmem:[%s5] sm:$0xff]
    %v228 = vld [vmem:[%s5 + $0x8] sm:$0xff]
    %v229 = vld [vmem:[%s5 + $0x10] sm:$0xff]
    %v230 = vld [vmem:[%s5 + $0x18] sm:$0xff]
    %v231 = vld [vmem:[%s5 + $0x20] sm:$0xff]
    %v232 = vld [vmem:[%s5 + $0x28] sm:$0xff]
    %v233 = vld [vmem:[%s5 + $0x30] sm:$0xff]
    %v234 = vld [vmem:[%s5 + $0x38] sm:$0xff]
    %v235 = vld [vmem:[%s6] sm:$0x1]
    %v237 = vlaneseq
    %v238 = vshrl.u32 %v237, 7
    %v239 = vsub.s32 0, %v238
    %v240 = vrot.slane %v235, %v239
    %v243 = vsel %vm152, %v226, 0
    %245 = vmatprep.subr.mxu0 0.0
    %246 = vmatpush1.msra.mxu0 0.0
    %247 = vmatprep.subr.mxu0 0.0
    %248 = vmatpush1.msra.mxu0 0.0
    %249 = vmatprep.subr.mxu0 0.0
    %250 = vmatpush1.msra.mxu0 0.0
    %251 = vmatprep.subr.mxu0 0.0
    %252 = vmatpush1.msra.mxu0 0.0
    %253 = vmatprep.subr.mxu0 0.0
    %254 = vmatpush1.msra.mxu0 0.0
    %255 = vmatprep.subr.mxu0 0.0
    %256 = vmatpush1.msra.mxu0 0.0
    %257 = vmatprep.subr.mxu0 0.0
    %258 = vmatpush1.msra.mxu0 0.0
    %259 = vmatprep.subr.mxu0 0.0
    %260 = vmatpush1.msra.mxu0 0.0
    %261 = vmatprep.subr.mxu0 0.0
    %262 = vmatpush1.msra.mxu0 %v234
    %263 = vmatprep.subr.mxu0 0.0
    %264 = vmatpush1.msra.mxu0 %v233
    %265 = vmatprep.subr.mxu0 0.0
    %266 = vmatpush1.msra.mxu0 %v232
    %267 = vmatprep.subr.mxu0 0.0
    %268 = vmatpush1.msra.mxu0 %v231
    %269 = vmatprep.subr.mxu0 0.0
    %270 = vmatpush1.msra.mxu0 %v230
    %271 = vmatprep.subr.mxu0 0.0
    %272 = vmatpush1.msra.mxu0 %v229
    %273 = vmatprep.subr.mxu0 0.0
    %274 = vmatpush1.msra.mxu0 %v228
    %275 = vmatprep.subr.mxu0 0.0
    %276 = vmatpush1.msra.mxu0 %v227
    %277 = vmatprep.subr.mxu0 0.0
    %278 = vmatpush2.msra.mxu0 0.0
    %279 = vmatprep.subr.mxu0 0.0
    %280 = vmatpush2.msra.mxu0 0.0
    %281 = vmatprep.subr.mxu0 0.0
    %282 = vmatpush2.msra.mxu0 0.0
    %283 = vmatprep.subr.mxu0 0.0
    %284 = vmatpush2.msra.mxu0 0.0
    %285 = vmatprep.subr.mxu0 0.0
    %286 = vmatpush2.msra.mxu0 0.0
    %287 = vmatprep.subr.mxu0 0.0
    %288 = vmatpush2.msra.mxu0 0.0
    %289 = vmatprep.subr.mxu0 0.0
    %290 = vmatpush2.msra.mxu0 0.0
    %291 = vmatprep.subr.mxu0 0.0
    %292 = vmatpush2.msra.mxu0 0.0
    %293 = vmatprep.subr.mxu0 0.0
    %294 = vmatpush2.msra.mxu0 0.0
    %295 = vmatprep.subr.mxu0 0.0
    %296 = vmatpush2.msra.mxu0 0.0
    %297 = vmatprep.subr.mxu0 0.0
    %298 = vmatpush2.msra.mxu0 0.0
    %299 = vmatprep.subr.mxu0 0.0
    %300 = vmatpush2.msra.mxu0 0.0
    %301 = vmatprep.subr.mxu0 0.0
    %302 = vmatpush2.msra.mxu0 0.0
    %303 = vmatprep.subr.mxu0 0.0
    %304 = vmatpush2.msra.mxu0 0.0
    %305 = vmatprep.subr.mxu0 0.0
    %306 = vmatpush2.msra.mxu0 0.0
    %307 = vmatprep.subr.mxu0 0.0
    %308 = vmatpush2.msra.mxu0 0.0
    %309 = vmatprep.mubr.f32.mxu0 0.0
    %310 = vmatmul.mubr.f32.gmra.mxu0 %v243
    %v311 = vpop.f32.mrf.mxu0
    %v312 = vadd.f32 %v240, %v311
    %v313 = vpop.f32.mrf.mxu0
    %314 = vdwg.mxu0
    %vm315 = vcmask 31744
    %316 = vst.msk [vmem:[#allocation7] sm:$0xff] %vm315, %v312
    // Predicated region
    $region38: #{tpu_custom_call.1} parent=1 // pred_check
      _
    $region39: #{tpu_custom_call.1} parent=1 // pred_check_branch
      %318 = sbr.rel (0) target = $region41
    $region40: #{tpu_custom_call.1} parent=1 // pred_region
      %s320 = ssub.s32 128, 32
      %321 = vsyncadd [#allocation4], %s320
      %s322 = sshll.u32 [#allocation7], 4
      %s323 = int_to_ptr.vmem [resolvable:$true] %s322
      %328 = dma.vmem_to_hbm [thread:$0]  %s323, 32, %s7, [#allocation4], 32, 32, 2
    $region41: #{tpu_custom_call.1} parent=1 // pred_fallthru
      _
    // Predicated region
    $region42: #{tpu_custom_call.1} parent=1 // pred_check
      _
    $region43: #{tpu_custom_call.1} parent=1 // pred_check_branch
      %330 = sbr.rel (0) target = $region45
    $region44: #{tpu_custom_call.1} parent=1 // pred_region
      %331 = dma.done [#allocation4], 128
    $region45: #{tpu_custom_call.1} parent=1 // pred_fallthru
      _
    %332 = vsyncpa [#allocation3], 1
    %333 = vsyncpa [#allocation6], 1
    %334 = vsyncpa [#allocation4], 1

</llo_original>
